<compile_context>
chip_gen: v7x
topology: tpu7x:2x2x1
jax: 0.10.0
libtpu: 0.0.40
codegen_flags: <defaults>
</compile_context>

<pallas_src>
import jax
import jax.numpy as jnp
from jax.experimental import pallas as pl
from jax.experimental.pallas import tpu as pltpu


def _round_up(x, m):
    return ((x + m - 1) // m) * m


def _nonlinear_average_kernel(x_ref, w1_ref, b1_ref, w2_ref, b2_ref, o_ref):
    rows, _ = x_ref.shape            # rows = TB * S
    H = w1_ref.shape[1]
    TB = o_ref.shape[0]
    S = rows // TB

    # Linear 1 (tall-M matmul on the MXU) + bias + Tanh (EUP slot).
    h = jnp.dot(x_ref[...], w1_ref[...], preferred_element_type=jnp.float32)
    h = jnp.tanh(h + b1_ref[...])                              # (rows, H) f32

    # LayerNorm over features (biased variance, eps=1e-5).  gamma/beta are
    # folded into w2/b2 in the wrapper; var via E[h^2]-mu^2 saves one
    # (rows, H) subtract (numerically safe: |h| <= 1 after tanh).
    inv_H = 1.0 / H
    mu = jnp.sum(h, axis=-1, keepdims=True) * inv_H
    var = jnp.sum(h * h, axis=-1, keepdims=True) * inv_H - mu * mu
    hn = (h - mu) * jax.lax.rsqrt(var + 1e-5)

    # Mean over the sequence axis BEFORE the second Linear (exact: affine map
    # commutes with the mean), shrinking the second matmul by a factor of S.
    # When S % 8 == 0 each (S, H) slab is made of whole (8,128) sublane tiles,
    # so this reshape is layout-preserving (no relayout copy).
    h_mean = jnp.sum(hn.reshape(TB, S, H), axis=1) * (1.0 / S)  # (TB, H)

    # Linear 2 with folded gamma/beta (last_activation = Identity).
    o_ref[...] = (jnp.dot(h_mean, w2_ref[...],
                          preferred_element_type=jnp.float32)
                  + b2_ref[...])                               # (TB, D_out)


def nonlinear_average(x, w1, b1, gamma, beta, w2, b2, *,
                      target_rows=8192,
                      vmem_limit_bytes=48 * 1024 * 1024,
                      use_bf16_inputs=False):
    B, S, D_in = x.shape
    H = w1.shape[1]
    D_out = w2.shape[1]

    # One-time exact reparameterization: fold LayerNorm affine into Linear 2.
    w2f = (gamma[:, None] * w2).astype(jnp.float32)            # (H, D_out)
    b2f = (beta @ w2 + b2).reshape(1, D_out).astype(jnp.float32)
    b1r = b1.reshape(1, H).astype(jnp.float32)

    # Optional bf16 feed for the HBM-bound regime (x dominates traffic);
    # the matmul still accumulates in f32, post-matmul math stays f32.
    x_dt = jnp.bfloat16 if use_bf16_inputs else jnp.float32
    w1c = w1.astype(x_dt)

    # Batch tile: TB batch rows per grid step, TB a multiple of 8 so the
    # (TB, D_out) output block stores sublane-dense.  Size TB so the first
    # matmul sees ~target_rows rows/step (per-step bytes must dominate the
    # ~600-cycle step overhead), capped by the padded batch.
    B_pad_min = _round_up(B, 8)
    TB = max(8, (max(1, target_rows // S) // 8) * 8)
    TB = min(TB, B_pad_min)
    if B_pad_min >= 16:
        # Guarantee >= 2 grid steps so both v7x TensorCores get work.
        TB = min(TB, _round_up(-(-B_pad_min // 2), 8))
    B_pad = _round_up(B, TB)
    if B_pad != B:
        x = jnp.pad(x, ((0, B_pad - B), (0, 0), (0, 0)))

    # Flatten (B_pad, S, D_in) -> (B_pad*S, D_in) in HBM: free metadata, and
    # the kernel then never reshapes the big activation tile.
    x2d = x.reshape(B_pad * S, D_in).astype(x_dt)

    rows = TB * S
    const2d = lambda shape: pl.BlockSpec(shape, lambda b: (0, 0))

    out = pl.pallas_call(
        _nonlinear_average_kernel,
        out_shape=jax.ShapeDtypeStruct((B_pad, D_out), jnp.float32),
        grid_spec=pltpu.PrefetchScalarGridSpec(
            num_scalar_prefetch=0,
            grid=(B_pad // TB,),
            in_specs=[
                pl.BlockSpec((rows, D_in), lambda b: (b, 0)),  # x (flattened)
                const2d((D_in, H)),                            # w1
                const2d((1, H)),                               # b1
                const2d((H, D_out)),                           # w2 (folded)
                const2d((1, D_out)),                           # b2 (folded)
            ],
            out_specs=pl.BlockSpec((TB, D_out), lambda b: (b, 0)),
        ),
        compiler_params=pltpu.CompilerParams(
            dimension_semantics=("parallel",),
            vmem_limit_bytes=vmem_limit_bytes),
    )(x2d, w1c, b1r, w2f, b2f)

    # Zero-padded batch rows are independent and sliced off (the S-mean always
    # sees the real, full S, so no denominator masking is needed).
    return out[:B]


def reference(x, w1, b1, gamma, beta, w2, b2):
    h = x @ w1 + b1
    h = jnp.tanh(h)
    mu = jnp.mean(h, axis=-1, keepdims=True)
    var = jnp.mean((h - mu) ** 2, axis=-1, keepdims=True)
    h = (h - mu) / jnp.sqrt(var + 1e-5) * gamma + beta
    y = h @ w2 + b2
    return jnp.mean(y, axis=-2)


if __name__ == "__main__":
    B, S, D_in, H, D_out = 2, 8, 32, 64, 32

    key = jax.random.PRNGKey(0)
    kx, k1, k2, k3, k4, k5, k6 = jax.random.split(key, 7)

    x = jax.random.normal(kx, (B, S, D_in), dtype=jnp.float32)

    # Deterministic synthetic parameters (PyTorch-like uniform init scale).
    w1 = jax.random.uniform(k1, (D_in, H), jnp.float32, -1.0, 1.0) / jnp.sqrt(D_in)
    b1 = jax.random.uniform(k2, (H,), jnp.float32, -1.0, 1.0) / jnp.sqrt(D_in)
    gamma = 1.0 + 0.1 * jax.random.normal(k5, (H,), jnp.float32)
    beta = 0.1 * jax.random.normal(k6, (H,), jnp.float32)
    w2 = jax.random.uniform(k3, (H, D_out), jnp.float32, -1.0, 1.0) / jnp.sqrt(H)
    b2 = jax.random.uniform(k4, (D_out,), jnp.float32, -1.0, 1.0) / jnp.sqrt(H)

    # Small-shape run (single grid step, padded batch 2 -> 8).
    out = nonlinear_average(x, w1, b1, gamma, beta, w2, b2)
    out = jax.block_until_ready(out)
    ref = reference(x, w1, b1, gamma, beta, w2, b2)
    assert out.shape == (B, D_out)
    assert jnp.allclose(out, ref, atol=1e-4, rtol=1e-4)

    # Second quick check exercising batch padding + a 2-step grid (megacore
    # path) with the same tiny feature sizes.
    B2 = 37
    x2 = jax.random.normal(jax.random.PRNGKey(1), (B2, S, D_in), jnp.float32)
    out2 = jax.block_until_ready(
        nonlinear_average(x2, w1, b1, gamma, beta, w2, b2))
    ref2 = reference(x2, w1, b1, gamma, beta, w2, b2)
    assert out2.shape == (B2, D_out)
    assert jnp.allclose(out2, ref2, atol=1e-4, rtol=1e-4)

    print("KERNEL_OK")
</pallas_src>

<mosaic_0001>
module attributes {stable_mosaic.version = 11 : i64} {
  func.func @_nonlinear_average_kernel(%arg0: i32, %arg1: memref<64x32xf32, #tpu.memory_space<vmem>>, %arg2: memref<32x64xf32, #tpu.memory_space<vmem>>, %arg3: memref<1x64xf32, #tpu.memory_space<vmem>>, %arg4: memref<64x32xf32, #tpu.memory_space<vmem>>, %arg5: memref<1x32xf32, #tpu.memory_space<vmem>>, %arg6: memref<8x32xf32, #tpu.memory_space<vmem>>) attributes {dimension_semantics = [#tpu.dimension_semantics<parallel>], iteration_bounds = array<i64: 1>, scalar_prefetch = 0 : i64, scratch_operands = 0 : i64, tpu.core_type = #tpu.core_type<tc>, window_params = [{transform_indices = @transform_0, window_bounds = array<i64: 64, 32>}, {pipeline_mode = #tpu.pipeline_mode<synchronous>, transform_indices = @transform_1, window_bounds = array<i64: 32, 64>}, {pipeline_mode = #tpu.pipeline_mode<synchronous>, transform_indices = @transform_2, window_bounds = array<i64: 1, 64>}, {pipeline_mode = #tpu.pipeline_mode<synchronous>, transform_indices = @transform_3, window_bounds = array<i64: 64, 32>}, {pipeline_mode = #tpu.pipeline_mode<synchronous>, transform_indices = @transform_4, window_bounds = array<i64: 1, 32>}, {transform_indices = @transform_5, window_bounds = array<i64: 8, 32>}]} {
    %c0 = arith.constant 0 : index
    %c0_0 = arith.constant 0 : index
    %0 = vector.load %arg1[%c0, %c0_0] : memref<64x32xf32, #tpu.memory_space<vmem>>, vector<64x32xf32>
    %c0_1 = arith.constant 0 : index
    %c0_2 = arith.constant 0 : index
    %1 = vector.load %arg2[%c0_1, %c0_2] : memref<32x64xf32, #tpu.memory_space<vmem>>, vector<32x64xf32>
    %cst = arith.constant dense<0.000000e+00> : vector<64x64xf32>
    %2 = tpu.matmul %0, %1, %cst {dimension_numbers = #tpu.dot_dimension_numbers<[1], [0], [0], [1], [0, 0, 1, 1], [], []>} : vector<64x32xf32>, vector<32x64xf32>, vector<64x64xf32> -> vector<64x64xf32>
    %c0_3 = arith.constant 0 : index
    %c0_4 = arith.constant 0 : index
    %3 = vector.load %arg3[%c0_3, %c0_4] : memref<1x64xf32, #tpu.memory_space<vmem>>, vector<1x64xf32>
    %4 = vector.broadcast %3 : vector<1x64xf32> to vector<64x64xf32>
    %5 = arith.addf %2, %4 : vector<64x64xf32>
    %6 = math.tanh %5 : vector<64x64xf32>
    %cst_5 = arith.constant dense<0.000000e+00> : vector<64xf32>
    %7 = vector.multi_reduction <add>, %6, %cst_5 [1] : vector<64x64xf32> to vector<64xf32>
    %8 = vector.shape_cast %7 : vector<64xf32> to vector<64x1xf32>
    %cst_6 = arith.constant 1.562500e-02 : f32
    %9 = vector.broadcast %cst_6 : f32 to vector<64x1xf32>
    %10 = arith.mulf %8, %9 : vector<64x1xf32>
    %11 = arith.mulf %6, %6 : vector<64x64xf32>
    %cst_7 = arith.constant dense<0.000000e+00> : vector<64xf32>
    %12 = vector.multi_reduction <add>, %11, %cst_7 [1] : vector<64x64xf32> to vector<64xf32>
    %13 = vector.shape_cast %12 : vector<64xf32> to vector<64x1xf32>
    %cst_8 = arith.constant 1.562500e-02 : f32
    %14 = vector.broadcast %cst_8 : f32 to vector<64x1xf32>
    %15 = arith.mulf %13, %14 : vector<64x1xf32>
    %16 = arith.mulf %10, %10 : vector<64x1xf32>
    %17 = arith.subf %15, %16 : vector<64x1xf32>
    %18 = vector.broadcast %10 : vector<64x1xf32> to vector<64x64xf32>
    %19 = arith.subf %6, %18 : vector<64x64xf32>
    %cst_9 = arith.constant 9.99999974E-6 : f32
    %20 = vector.broadcast %cst_9 : f32 to vector<64x1xf32>
    %21 = arith.addf %17, %20 : vector<64x1xf32>
    %22 = math.rsqrt %21 : vector<64x1xf32>
    %23 = vector.broadcast %22 : vector<64x1xf32> to vector<64x64xf32>
    %24 = arith.mulf %19, %23 : vector<64x64xf32>
    %25 = vector.shape_cast %24 : vector<64x64xf32> to vector<8x8x64xf32>
    %cst_10 = arith.constant dense<0.000000e+00> : vector<8x64xf32>
    %26 = vector.multi_reduction <add>, %25, %cst_10 [1] : vector<8x8x64xf32> to vector<8x64xf32>
    %cst_11 = arith.constant 1.250000e-01 : f32
    %27 = vector.broadcast %cst_11 : f32 to vector<8x64xf32>
    %28 = arith.mulf %26, %27 : vector<8x64xf32>
    %c0_12 = arith.constant 0 : index
    %c0_13 = arith.constant 0 : index
    %29 = vector.load %arg4[%c0_12, %c0_13] : memref<64x32xf32, #tpu.memory_space<vmem>>, vector<64x32xf32>
    %cst_14 = arith.constant dense<0.000000e+00> : vector<8x32xf32>
    %30 = tpu.matmul %28, %29, %cst_14 {dimension_numbers = #tpu.dot_dimension_numbers<[1], [0], [0], [1], [0, 0, 1, 1], [], []>} : vector<8x64xf32>, vector<64x32xf32>, vector<8x32xf32> -> vector<8x32xf32>
    %c0_15 = arith.constant 0 : index
    %c0_16 = arith.constant 0 : index
    %31 = vector.load %arg5[%c0_15, %c0_16] : memref<1x32xf32, #tpu.memory_space<vmem>>, vector<1x32xf32>
    %32 = vector.broadcast %31 : vector<1x32xf32> to vector<8x32xf32>
    %33 = arith.addf %30, %32 : vector<8x32xf32>
    %c0_17 = arith.constant 0 : index
    %c0_18 = arith.constant 0 : index
    %34 = vector.load %arg6[%c0_17, %c0_18] : memref<8x32xf32, #tpu.memory_space<vmem>>, vector<8x32xf32>
    tpu.vector_store %arg6[%c0_17, %c0_18], %33 {strides = array<i32>} : memref<8x32xf32, #tpu.memory_space<vmem>>, vector<8x32xf32>,
    return
  }
  func.func @transform_0(%arg0: i32) -> (i32, i32) {
    %c0_i32 = arith.constant 0 : i32
    %c0_i32_0 = arith.constant 0 : i32
    return %arg0, %c0_i32 : i32, i32
  }
  func.func @transform_1(%arg0: i32) -> (i32, i32) {
    %c0_i32 = arith.constant 0 : i32
    %c0_i32_0 = arith.constant 0 : i32
    %c0_i32_1 = arith.constant 0 : i32
    return %c0_i32, %c0_i32_0 : i32, i32
  }
  func.func @transform_2(%arg0: i32) -> (i32, i32) {
    %c0_i32 = arith.constant 0 : i32
    %c0_i32_0 = arith.constant 0 : i32
    %c0_i32_1 = arith.constant 0 : i32
    return %c0_i32, %c0_i32_0 : i32, i32
  }
  func.func @transform_3(%arg0: i32) -> (i32, i32) {
    %c0_i32 = arith.constant 0 : i32
    %c0_i32_0 = arith.constant 0 : i32
    %c0_i32_1 = arith.constant 0 : i32
    return %c0_i32, %c0_i32_0 : i32, i32
  }
  func.func @transform_4(%arg0: i32) -> (i32, i32) {
    %c0_i32 = arith.constant 0 : i32
    %c0_i32_0 = arith.constant 0 : i32
    %c0_i32_1 = arith.constant 0 : i32
    return %c0_i32, %c0_i32_0 : i32, i32
  }
  func.func @transform_5(%arg0: i32) -> (i32, i32) {
    %c0_i32 = arith.constant 0 : i32
    %c0_i32_0 = arith.constant 0 : i32
    return %arg0, %c0_i32 : i32, i32
  }
}

</mosaic_0001>

<llo_original>
// kernel: tpu_custom_call.1
$region0: #{tpu_custom_call.1}
  #allocation0 [shape = 'u32[]', space=smem, size = 0x4, offset = 0x4, fixed_abs, tag = 'smem constant byte address 0x4 - core index']
  #allocation1 [shape = 'u32[144,128]{1,0:T(1,128)}', space=vmem, size = 0x12000, scoped, tag = 'internal scratch']
  %s0 = inlined_call_operand.vmem [shape: f32[64,32], index: 0, kind: input, shape index: {}]
  %s1 = inlined_call_operand.vmem [shape: f32[32,64], index: 1, kind: input, shape index: {}]
  %s2 = inlined_call_operand.vmem [shape: f32[1,64], index: 2, kind: input, shape index: {}]
  %s3 = inlined_call_operand.vmem [shape: f32[64,32], index: 3, kind: input, shape index: {}]
  %s4 = inlined_call_operand.vmem [shape: f32[1,32], index: 4, kind: input, shape index: {}]
  %s5 = inlined_call_operand.hbm [shape: f32[8,32], index: 5, kind: output, shape index: {}]
  %s6 = sld [smem:[#allocation0]]
  $region30: #{tpu_custom_call.1} parent=0
    _
  %s8 = ssub.s32 1, %s6
  %s9 = scalar_select 0, %s8, %s6
  $region1: #{tpu_custom_call.1} parent=0
    #allocation2 [shape = 'u8[4096]{0}', space=vmem, size = 0x1000, scoped, tag = 'output window, operand 0, single buffered']
    #allocation3 [shape = 's32[1]{0}', space=sflag, size = 0x4, scoped, tag = 'scoped memory for tpu_custom_call.1']
    %10 = vsyncpa [#allocation3], 0
    // Predicated region
    $region2: #{tpu_custom_call.1} parent=1 // pred_check
      _
    $region3: #{tpu_custom_call.1} parent=1 // pred_check_branch
      %12 = sbr.rel (0) target = $region5
    $region4: #{tpu_custom_call.1} parent=1 // pred_region
      _
    $region5: #{tpu_custom_call.1} parent=1 // pred_fallthru
      _
    // Predicated region
    $region6: #{tpu_custom_call.1} parent=1 // pred_check
      _
    $region7: #{tpu_custom_call.1} parent=1 // pred_check_branch
      %14 = sbr.rel (0) target = $region9
    $region8: #{tpu_custom_call.1} parent=1 // pred_region
      _
    $region9: #{tpu_custom_call.1} parent=1 // pred_fallthru
      _
    // Predicated region
    $region10: #{tpu_custom_call.1} parent=1 // pred_check
      _
    $region11: #{tpu_custom_call.1} parent=1 // pred_check_branch
      %16 = sbr.rel (0) target = $region13
    $region12: #{tpu_custom_call.1} parent=1 // pred_region
      _
    $region13: #{tpu_custom_call.1} parent=1 // pred_fallthru
      _
    // Predicated region
    $region14: #{tpu_custom_call.1} parent=1 // pred_check
      _
    $region15: #{tpu_custom_call.1} parent=1 // pred_check_branch
      %18 = sbr.rel (0) target = $region17
    $region16: #{tpu_custom_call.1} parent=1 // pred_region
      _
    $region17: #{tpu_custom_call.1} parent=1 // pred_fallthru
      _
    // Predicated region
    $region18: #{tpu_custom_call.1} parent=1 // pred_check
      _
    $region19: #{tpu_custom_call.1} parent=1 // pred_check_branch
      %20 = sbr.rel (0) target = $region21
    $region20: #{tpu_custom_call.1} parent=1 // pred_region
      _
    $region21: #{tpu_custom_call.1} parent=1 // pred_fallthru
      _
    %v21 = vld [vmem:[%s0] sm:$0xff]
    %v22 = vld [vmem:[%s0 + $0x8] sm:$0xff]
    %v23 = vld [vmem:[%s0 + $0x10] sm:$0xff]
    %v24 = vld [vmem:[%s0 + $0x18] sm:$0xff]
    %v25 = vld [vmem:[%s0 + $0x20] sm:$0xff]
    %v26 = vld [vmem:[%s0 + $0x28] sm:$0xff]
    %v27 = vld [vmem:[%s0 + $0x30] sm:$0xff]
    %v28 = vld [vmem:[%s0 + $0x38] sm:$0xff]
    %v29 = vld [vmem:[%s1] sm:$0xff]
    %v30 = vld [vmem:[%s1 + $0x8] sm:$0xff]
    %v31 = vld [vmem:[%s1 + $0x10] sm:$0xff]
    %v32 = vld [vmem:[%s1 + $0x18] sm:$0xff]
    %v33 = vld [vmem:[%s2] sm:$0x1]
    %v35 = vlaneseq
    %v36 = vshrl.u32 %v35, 7
    %v37 = vsub.s32 0, %v36
    %v38 = vrot.slane %v33, %v37
    %vm40 = vcmask 261120
    %v42 = vsel %vm40, %v21, 0
    %v45 = vsel %vm40, %v22, 0
    %v48 = vsel %vm40, %v23, 0
    %v51 = vsel %vm40, %v24, 0
    %v54 = vsel %vm40, %v25, 0
    %v57 = vsel %vm40, %v26, 0
    %v60 = vsel %vm40, %v27, 0
    %v63 = vsel %vm40, %v28, 0
    %65 = vmatprep.subr.mxu0 0.0
    %66 = vmatpush1.msra.mxu0 %v29
    %67 = vmatprep.subr.mxu0 0.0
    %68 = vmatpush1.msra.mxu0 %v30
    %69 = vmatprep.subr.mxu0 0.0
    %70 = vmatpush1.msra.mxu0 %v31
    %71 = vmatprep.subr.mxu0 0.0
    %72 = vmatpush1.msra.mxu0 %v32
    %73 = vmatprep.subr.mxu0 0.0
    %74 = vmatpush1.msra.mxu0 0.0
    %75 = vmatprep.subr.mxu0 0.0
    %76 = vmatpush1.msra.mxu0 0.0
    %77 = vmatprep.subr.mxu0 0.0
    %78 = vmatpush1.msra.mxu0 0.0
    %79 = vmatprep.subr.mxu0 0.0
    %80 = vmatpush1.msra.mxu0 0.0
    %81 = vmatprep.subr.mxu0 0.0
    %82 = vmatpush1.msra.mxu0 0.0
    %83 = vmatprep.subr.mxu0 0.0
    %84 = vmatpush1.msra.mxu0 0.0
    %85 = vmatprep.subr.mxu0 0.0
    %86 = vmatpush1.msra.mxu0 0.0
    %87 = vmatprep.subr.mxu0 0.0
    %88 = vmatpush1.msra.mxu0 0.0
    %89 = vmatprep.subr.mxu0 0.0
    %90 = vmatpush1.msra.mxu0 0.0
    %91 = vmatprep.subr.mxu0 0.0
    %92 = vmatpush1.msra.mxu0 0.0
    %93 = vmatprep.subr.mxu0 0.0
    %94 = vmatpush1.msra.mxu0 0.0
    %95 = vmatprep.subr.mxu0 0.0
    %96 = vmatpush1.msra.mxu0 0.0
    %97 = vmatprep.subr.mxu0 0.0
    %98 = vmatpush1.msra.mxu0 0.0
    %99 = vmatprep.subr.mxu0 0.0
    %100 = vmatpush1.msra.mxu0 0.0
    %101 = vmatprep.subr.mxu0 0.0
    %102 = vmatpush1.msra.mxu0 0.0
    %103 = vmatprep.subr.mxu0 0.0
    %104 = vmatpush1.msra.mxu0 0.0
    %105 = vmatprep.subr.mxu0 0.0
    %106 = vmatpush1.msra.mxu0 0.0
    %107 = vmatprep.subr.mxu0 0.0
    %108 = vmatpush1.msra.mxu0 0.0
    %109 = vmatprep.subr.mxu0 0.0
    %110 = vmatpush1.msra.mxu0 0.0
    %111 = vmatprep.subr.mxu0 0.0
    %112 = vmatpush1.msra.mxu0 0.0
    %113 = vmatprep.subr.mxu0 0.0
    %114 = vmatpush1.msra.mxu0 0.0
    %115 = vmatprep.subr.mxu0 0.0
    %116 = vmatpush1.msra.mxu0 0.0
    %117 = vmatprep.subr.mxu0 0.0
    %118 = vmatpush1.msra.mxu0 0.0
    %119 = vmatprep.subr.mxu0 0.0
    %120 = vmatpush1.msra.mxu0 0.0
    %121 = vmatprep.subr.mxu0 0.0
    %122 = vmatpush1.msra.mxu0 0.0
    %123 = vmatprep.subr.mxu0 0.0
    %124 = vmatpush1.msra.mxu0 0.0
    %125 = vmatprep.subr.mxu0 0.0
    %126 = vmatpush1.msra.mxu0 0.0
    %127 = vmatprep.subr.mxu0 0.0
    %128 = vmatpush1.msra.mxu0 0.0
    %129 = vmatprep.mubr.f32.mxu0 0.0
    %130 = vmatmul.mubr.f32.gmra.mrb[0].mxu0 %v42
    %v131 = vpop.f32.mrb[0].mxu0
    %v132 = vadd.f32 %v38, %v131
    %v133 = vpop.f32.mrb[0].mxu0
    %134 = vmatprep.mubr.f32.mxu0 0.0
    %135 = vmatmul.mubr.f32.gmra.mrb[0].mxu0 %v45
    %v136 = vpop.f32.mrb[0].mxu0
    %v137 = vadd.f32 %v38, %v136
    %v138 = vpop.f32.mrb[0].mxu0
    %139 = vmatprep.mubr.f32.mxu0 0.0
    %140 = vmatmul.mubr.f32.gmra.mrb[0].mxu0 %v48
    %v141 = vpop.f32.mrb[0].mxu0
    %v142 = vadd.f32 %v38, %v141
    %v143 = vpop.f32.mrb[0].mxu0
    %144 = vmatprep.mubr.f32.mxu0 0.0
    %145 = vmatmul.mubr.f32.gmra.mrb[0].mxu0 %v51
    %v146 = vpop.f32.mrb[0].mxu0
    %v147 = vadd.f32 %v38, %v146
    %v148 = vpop.f32.mrb[0].mxu0
    %149 = vmatprep.mubr.f32.mxu0 0.0
    %150 = vmatmul.mubr.f32.gmra.mrb[0].mxu0 %v54
    %v151 = vpop.f32.mrb[0].mxu0
    %v152 = vadd.f32 %v38, %v151
    %v153 = vpop.f32.mrb[0].mxu0
    %154 = vmatprep.mubr.f32.mxu0 0.0
    %155 = vmatmul.mubr.f32.gmra.mrb[0].mxu0 %v57
    %v156 = vpop.f32.mrb[0].mxu0
    %v157 = vadd.f32 %v38, %v156
    %v158 = vpop.f32.mrb[0].mxu0
    %159 = vmatprep.mubr.f32.mxu0 0.0
    %160 = vmatmul.mubr.f32.gmra.mrb[0].mxu0 %v60
    %v161 = vpop.f32.mrb[0].mxu0
    %v162 = vadd.f32 %v38, %v161
    %v163 = vpop.f32.mrb[0].mxu0
    %164 = vmatprep.mubr.f32.mxu0 0.0
    %165 = vmatmul.mubr.f32.gmra.mrb[0].mxu0 %v63
    %v166 = vpop.f32.mrb[0].mxu0
    %v167 = vadd.f32 %v38, %v166
    %v168 = vpop.f32.mrb[0].mxu0
    %169 = vdwg.mxu0
    %v170 = vtanh.pop %v132
    %v171 = vtanh.pop %v137
    %v172 = vtanh.pop %v142
    %v173 = vtanh.pop %v147
    %v174 = vtanh.pop %v152
    %v175 = vtanh.pop %v157
    %v176 = vtanh.pop %v162
    %v177 = vtanh.pop %v167
    %vm178 = vcmask 523264
    %v179 = vsel %vm178, %v170, 0.0
    %180 = vadd.xlane.f32.xlu0 %v179
    %v181 = vpop.xlane.xlu0 %180
    %v182 = vsel %vm178, %v171, 0.0
    %183 = vadd.xlane.f32.xlu0 %v182
    %v184 = vpop.xlane.xlu0 %183
    %v185 = vsel %vm178, %v172, 0.0
    %186 = vadd.xlane.f32.xlu0 %v185
    %v187 = vpop.xlane.xlu0 %186
    %v188 = vsel %vm178, %v173, 0.0
    %189 = vadd.xlane.f32.xlu0 %v188
    %v190 = vpop.xlane.xlu0 %189
    %v191 = vsel %vm178, %v174, 0.0
    %192 = vadd.xlane.f32.xlu0 %v191
    %v193 = vpop.xlane.xlu0 %192
    %v194 = vsel %vm178, %v175, 0.0
    %195 = vadd.xlane.f32.xlu0 %v194
    %v196 = vpop.xlane.xlu0 %195
    %v197 = vsel %vm178, %v176, 0.0
    %198 = vadd.xlane.f32.xlu0 %v197
    %v199 = vpop.xlane.xlu0 %198
    %v200 = vsel %vm178, %v177, 0.0
    %201 = vadd.xlane.f32.xlu0 %v200
    %v202 = vpop.xlane.xlu0 %201
    %v203 = vmul.f32 %v181, 0.015625
    %v204 = vmul.f32 %v184, 0.015625
    %v205 = vmul.f32 %v187, 0.015625
    %v206 = vmul.f32 %v190, 0.015625
    %v207 = vmul.f32 %v193, 0.015625
    %v208 = vmul.f32 %v196, 0.015625
    %v209 = vmul.f32 %v199, 0.015625
    %v210 = vmul.f32 %v202, 0.015625
    %v211 = vmul.f32 %v170, %v170
    %v212 = vmul.f32 %v171, %v171
    %v213 = vmul.f32 %v172, %v172
    %v214 = vmul.f32 %v173, %v173
    %v215 = vmul.f32 %v174, %v174
    %v216 = vmul.f32 %v175, %v175
    %v217 = vmul.f32 %v176, %v176
    %v218 = vmul.f32 %v177, %v177
    %v219 = vsel %vm178, %v211, 0.0
    %220 = vadd.xlane.f32.xlu0 %v219
    %v221 = vpop.xlane.xlu0 %220
    %v222 = vsel %vm178, %v212, 0.0
    %223 = vadd.xlane.f32.xlu0 %v222
    %v224 = vpop.xlane.xlu0 %223
    %v225 = vsel %vm178, %v213, 0.0
    %226 = vadd.xlane.f32.xlu0 %v225
    %v227 = vpop.xlane.xlu0 %226
    %v228 = vsel %vm178, %v214, 0.0
    %229 = vadd.xlane.f32.xlu0 %v228
    %v230 = vpop.xlane.xlu0 %229
    %v231 = vsel %vm178, %v215, 0.0
    %232 = vadd.xlane.f32.xlu0 %v231
    %v233 = vpop.xlane.xlu0 %232
    %v234 = vsel %vm178, %v216, 0.0
    %235 = vadd.xlane.f32.xlu0 %v234
    %v236 = vpop.xlane.xlu0 %235
    %v237 = vsel %vm178, %v217, 0.0
    %238 = vadd.xlane.f32.xlu0 %v237
    %v239 = vpop.xlane.xlu0 %238
    %v240 = vsel %vm178, %v218, 0.0
    %241 = vadd.xlane.f32.xlu0 %v240
    %v242 = vpop.xlane.xlu0 %241
    %v243 = vmul.f32 %v221, 0.015625
    %v244 = vmul.f32 %v224, 0.015625
    %v245 = vmul.f32 %v227, 0.015625
    %v246 = vmul.f32 %v230, 0.015625
    %v247 = vmul.f32 %v233, 0.015625
    %v248 = vmul.f32 %v236, 0.015625
    %v249 = vmul.f32 %v239, 0.015625
    %v250 = vmul.f32 %v242, 0.015625
    %v251 = vmul.f32 %v203, %v203
    %v252 = vmul.f32 %v204, %v204
    %v253 = vmul.f32 %v205, %v205
    %v254 = vmul.f32 %v206, %v206
    %v255 = vmul.f32 %v207, %v207
    %v256 = vmul.f32 %v208, %v208
    %v257 = vmul.f32 %v209, %v209
    %v258 = vmul.f32 %v210, %v210
    %v259 = vsub.f32 %v243, %v251
    %v260 = vsub.f32 %v244, %v252
    %v261 = vsub.f32 %v245, %v253
    %v262 = vsub.f32 %v246, %v254
    %v263 = vsub.f32 %v247, %v255
    %v264 = vsub.f32 %v248, %v256
    %v265 = vsub.f32 %v249, %v257
    %v266 = vsub.f32 %v250, %v258
    %v267 = vsub.f32 %v170, %v203
    %v268 = vsub.f32 %v171, %v204
    %v269 = vsub.f32 %v172, %v205
    %v270 = vsub.f32 %v173, %v206
    %v271 = vsub.f32 %v174, %v207
    %v272 = vsub.f32 %v175, %v208
    %v273 = vsub.f32 %v176, %v209
    %v274 = vsub.f32 %v177, %v210
    %v275 = vadd.f32 %v259, 1e-05
    %v276 = vadd.f32 %v260, 1e-05
    %v277 = vadd.f32 %v261, 1e-05
    %v278 = vadd.f32 %v262, 1e-05
    %v279 = vadd.f32 %v263, 1e-05
    %v280 = vadd.f32 %v264, 1e-05
    %v281 = vadd.f32 %v265, 1e-05
    %v282 = vadd.f32 %v266, 1e-05
    %v283 = vrsqrt.pop %v275
    %v284 = vrsqrt.pop %v276
    %v285 = vrsqrt.pop %v277
    %v286 = vrsqrt.pop %v278
    %v287 = vrsqrt.pop %v279
    %v288 = vrsqrt.pop %v280
    %v289 = vrsqrt.pop %v281
    %v290 = vrsqrt.pop %v282
    %v291 = vmul.f32 %v267, %v283
    %v292 = vmul.f32 %v268, %v284
    %v293 = vmul.f32 %v269, %v285
    %v294 = vmul.f32 %v270, %v286
    %v295 = vmul.f32 %v271, %v287
    %v296 = vmul.f32 %v272, %v288
    %v297 = vmul.f32 %v273, %v289
    %v298 = vmul.f32 %v274, %v290
    %v299 = vsel %vm178, %v291, 0.0
    %v300 = vrot.slane %v299, 4
    %v301 = vadd.f32 %v299, %v300
    %v302 = vrot.slane %v301, 2
    %v303 = vadd.f32 %v301, %v302
    %v304 = vrot.slane %v303, 1
    %v305 = vadd.f32 %v303, %v304
    %v306 = vsel %vm178, %v292, 0.0
    %v307 = vrot.slane %v306, 4
    %v308 = vadd.f32 %v306, %v307
    %v309 = vrot.slane %v308, 2
    %v310 = vadd.f32 %v308, %v309
    %v311 = vrot.slane %v310, 1
    %v312 = vadd.f32 %v310, %v311
    %v313 = vsel %vm178, %v293, 0.0
    %v314 = vrot.slane %v313, 4
    %v315 = vadd.f32 %v313, %v314
    %v316 = vrot.slane %v315, 2
    %v317 = vadd.f32 %v315, %v316
    %v318 = vrot.slane %v317, 1
    %v319 = vadd.f32 %v317, %v318
    %v320 = vsel %vm178, %v294, 0.0
    %v321 = vrot.slane %v320, 4
    %v322 = vadd.f32 %v320, %v321
    %v323 = vrot.slane %v322, 2
    %v324 = vadd.f32 %v322, %v323
    %v325 = vrot.slane %v324, 1
    %v326 = vadd.f32 %v324, %v325
    %v327 = vsel %vm178, %v295, 0.0
    %v328 = vrot.slane %v327, 4
    %v329 = vadd.f32 %v327, %v328
    %v330 = vrot.slane %v329, 2
    %v331 = vadd.f32 %v329, %v330
    %v332 = vrot.slane %v331, 1
    %v333 = vadd.f32 %v331, %v332
    %v334 = vsel %vm178, %v296, 0.0
    %v335 = vrot.slane %v334, 4
    %v336 = vadd.f32 %v334, %v335
    %v337 = vrot.slane %v336, 2
    %v338 = vadd.f32 %v336, %v337
    %v339 = vrot.slane %v338, 1
    %v340 = vadd.f32 %v338, %v339
    %v341 = vsel %vm178, %v297, 0.0
    %v342 = vrot.slane %v341, 4
    %v343 = vadd.f32 %v341, %v342
    %v344 = vrot.slane %v343, 2
    %v345 = vadd.f32 %v343, %v344
    %v346 = vrot.slane %v345, 1
    %v347 = vadd.f32 %v345, %v346
    %v348 = vsel %vm178, %v298, 0.0
    %v349 = vrot.slane %v348, 4
    %v350 = vadd.f32 %v348, %v349
    %v351 = vrot.slane %v350, 2
    %v352 = vadd.f32 %v350, %v351
    %v353 = vrot.slane %v352, 1
    %v354 = vadd.f32 %v352, %v353
    %v355 = vmul.f32 %v305, 0.125
    %v356 = vmul.f32 %v312, 0.125
    %v357 = vmul.f32 %v319, 0.125
    %v358 = vmul.f32 %v326, 0.125
    %v359 = vmul.f32 %v333, 0.125
    %v360 = vmul.f32 %v340, 0.125
    %v361 = vmul.f32 %v347, 0.125
    %v362 = vmul.f32 %v354, 0.125
    %v363 = vld [vmem:[%s3] sm:$0xff]
    %v364 = vld [vmem:[%s3 + $0x8] sm:$0xff]
    %v365 = vld [vmem:[%s3 + $0x10] sm:$0xff]
    %v366 = vld [vmem:[%s3 + $0x18] sm:$0xff]
    %v367 = vld [vmem:[%s3 + $0x20] sm:$0xff]
    %v368 = vld [vmem:[%s3 + $0x28] sm:$0xff]
    %v369 = vld [vmem:[%s3 + $0x30] sm:$0xff]
    %v370 = vld [vmem:[%s3 + $0x38] sm:$0xff]
    %v371 = vld [vmem:[%s4] sm:$0x1]
    %v373 = vlaneseq
    %v374 = vshrl.u32 %v373, 7
    %v375 = vsub.s32 0, %v374
    %v376 = vrot.slane %v371, %v375
    %vm386 = vcmask 1041409
    %v387 = vsel %vm386, %v356, %v355
    %vm388 = vcmask 1042434
    %v389 = vsel %vm388, %v357, %v387
    %vm390 = vcmask 1043459
    %v391 = vsel %vm390, %v358, %v389
    %vm392 = vcmask 1044484
    %v393 = vsel %vm392, %v359, %v391
    %vm394 = vcmask 1045509
    %v395 = vsel %vm394, %v360, %v393
    %vm396 = vcmask 1046534
    %v397 = vsel %vm396, %v361, %v395
    %vm398 = vcmask 1047559
    %v399 = vsel %vm398, %v362, %v397
    %v400 = vsel %vm178, %v399, 0
    %402 = vmatprep.subr.mxu0 0.0
    %403 = vmatpush1.msra.mxu0 %v363
    %404 = vmatprep.subr.mxu0 0.0
    %405 = vmatpush1.msra.mxu0 %v364
    %406 = vmatprep.subr.mxu0 0.0
    %407 = vmatpush1.msra.mxu0 %v365
    %408 = vmatprep.subr.mxu0 0.0
    %409 = vmatpush1.msra.mxu0 %v366
    %410 = vmatprep.subr.mxu0 0.0
    %411 = vmatpush1.msra.mxu0 %v367
    %412 = vmatprep.subr.mxu0 0.0
    %413 = vmatpush1.msra.mxu0 %v368
    %414 = vmatprep.subr.mxu0 0.0
    %415 = vmatpush1.msra.mxu0 %v369
    %416 = vmatprep.subr.mxu0 0.0
    %417 = vmatpush1.msra.mxu0 %v370
    %418 = vmatprep.subr.mxu0 0.0
    %419 = vmatpush1.msra.mxu0 0.0
    %420 = vmatprep.subr.mxu0 0.0
    %421 = vmatpush1.msra.mxu0 0.0
    %422 = vmatprep.subr.mxu0 0.0
    %423 = vmatpush1.msra.mxu0 0.0
    %424 = vmatprep.subr.mxu0 0.0
    %425 = vmatpush1.msra.mxu0 0.0
    %426 = vmatprep.subr.mxu0 0.0
    %427 = vmatpush1.msra.mxu0 0.0
    %428 = vmatprep.subr.mxu0 0.0
    %429 = vmatpush1.msra.mxu0 0.0
    %430 = vmatprep.subr.mxu0 0.0
    %431 = vmatpush1.msra.mxu0 0.0
    %432 = vmatprep.subr.mxu0 0.0
    %433 = vmatpush1.msra.mxu0 0.0
    %434 = vmatprep.subr.mxu0 0.0
    %435 = vmatpush1.msra.mxu0 0.0
    %436 = vmatprep.subr.mxu0 0.0
    %437 = vmatpush1.msra.mxu0 0.0
    %438 = vmatprep.subr.mxu0 0.0
    %439 = vmatpush1.msra.mxu0 0.0
    %440 = vmatprep.subr.mxu0 0.0
    %441 = vmatpush1.msra.mxu0 0.0
    %442 = vmatprep.subr.mxu0 0.0
    %443 = vmatpush1.msra.mxu0 0.0
    %444 = vmatprep.subr.mxu0 0.0
    %445 = vmatpush1.msra.mxu0 0.0
    %446 = vmatprep.subr.mxu0 0.0
    %447 = vmatpush1.msra.mxu0 0.0
    %448 = vmatprep.subr.mxu0 0.0
    %449 = vmatpush1.msra.mxu0 0.0
    %450 = vmatprep.subr.mxu0 0.0
    %451 = vmatpush1.msra.mxu0 0.0
    %452 = vmatprep.subr.mxu0 0.0
    %453 = vmatpush1.msra.mxu0 0.0
    %454 = vmatprep.subr.mxu0 0.0
    %455 = vmatpush1.msra.mxu0 0.0
    %456 = vmatprep.subr.mxu0 0.0
    %457 = vmatpush1.msra.mxu0 0.0
    %458 = vmatprep.subr.mxu0 0.0
    %459 = vmatpush1.msra.mxu0 0.0
    %460 = vmatprep.subr.mxu0 0.0
    %461 = vmatpush1.msra.mxu0 0.0
    %462 = vmatprep.subr.mxu0 0.0
    %463 = vmatpush1.msra.mxu0 0.0
    %464 = vmatprep.subr.mxu0 0.0
    %465 = vmatpush1.msra.mxu0 0.0
    %466 = vmatprep.mubr.f32.mxu0 0.0
    %467 = vmatmul.mubr.f32.gmra.mrb[0].mxu0 %v400
    %v468 = vpop.f32.mrb[0].mxu0
    %v469 = vadd.f32 %v376, %v468
    %v470 = vpop.f32.mrb[0].mxu0
    %471 = vdwg.mxu0
    %472 = vst.msk [vmem:[#allocation2] sm:$0xff] %vm40, %v469
    // Predicated region
    $region22: #{tpu_custom_call.1} parent=1 // pred_check
      _
    $region23: #{tpu_custom_call.1} parent=1 // pred_check_branch
      %474 = sbr.rel (0) target = $region25
    $region24: #{tpu_custom_call.1} parent=1 // pred_region
      %s476 = ssub.s32 128, 128
      %477 = vsyncadd [#allocation3], %s476
      %s479 = sshll.u32 [#allocation2], 4
      %s480 = int_to_ptr.vmem [resolvable:$true] %s479
      %482 = dma.vmem_to_hbm [thread:$0]  %s480, 128, %s5, [#allocation3]
    $region25: #{tpu_custom_call.1} parent=1 // pred_fallthru
      _
    // Predicated region
    $region26: #{tpu_custom_call.1} parent=1 // pred_check
      _
    $region27: #{tpu_custom_call.1} parent=1 // pred_check_branch
      %484 = sbr.rel (0) target = $region29
    $region28: #{tpu_custom_call.1} parent=1 // pred_region
      %485 = dma.done [#allocation3], 128
    $region29: #{tpu_custom_call.1} parent=1 // pred_fallthru
      _
    %486 = vsyncpa [#allocation3], 1

</llo_original>
